<compile_context>
chip_gen: v7x
topology: tpu7x:2x2x1
jax: 0.10.0
libtpu: 0.0.40
codegen_flags: <defaults>
</compile_context>

<pallas_src>
import jax
import jax.numpy as jnp
import numpy as np
from jax.experimental import pallas as pl
from jax.experimental.pallas import tpu as pltpu


# ---------------------------------------------------------------------------
# Kernel
# ---------------------------------------------------------------------------
def _basic_block_kernel(x_ref, w1_ref, sh1_ref, w2_ref, sh2_ref, o_ref, pad_ref):
    """Fused conv3x3+BN+ReLU -> conv3x3+BN+residual+ReLU, lane-dense layout.

    x_ref  : (Nb, H, W*C)   f32   lane-dense input block
    w*_ref : (3, W*C, W*C)  bf16  banded conv weights (kx + channels + BN scale folded)
    sh*_ref: (1, W*C)       f32   BN shift, tiled over W
    o_ref  : (Nb, H, W*C)   f32   lane-dense output block
    pad_ref: (H+2, W*C)     bf16  VMEM scratch (rows 0 and H+1 are the zero halo)
    """
    Nb, H, WC = x_ref.shape
    cdt = pad_ref.dtype

    # Zero only the two halo rows, once per grid step (interior rows are fully
    # overwritten below).  Deliberately NOT gated on program_id==0: on v7x the
    # "parallel" axis is split across 2 TensorCores and the second core never
    # runs step 0.
    pad_ref[0:1, :] = jnp.zeros((1, WC), cdt)
    pad_ref[H + 1:H + 2, :] = jnp.zeros((1, WC), cdt)

    def conv3x3(w_ref):
        # ky folded as 3 row-shifted matmuls; kx/channels folded into the band.
        acc = jnp.zeros((H, WC), jnp.float32)
        for ky in range(3):
            acc = acc + jnp.dot(pad_ref[ky:ky + H, :], w_ref[ky],
                                preferred_element_type=jnp.float32)
        return acc

    for b in range(Nb):                                   # static unrolled batch loop
        x = x_ref[b]                                      # (H, W*C) f32

        # --- conv1 + folded BN1 + ReLU (h1 stays on-chip) ---
        pad_ref[1:H + 1, :] = x.astype(cdt)
        h1 = jnp.maximum(conv3x3(w1_ref) + sh1_ref[...], 0.0)

        # --- conv2 + folded BN2 + identity residual + ReLU ---
        pad_ref[1:H + 1, :] = h1.astype(cdt)
        y = conv3x3(w2_ref) + sh2_ref[...] + x            # residual in f32
        o_ref[b] = jnp.maximum(y, 0.0).astype(o_ref.dtype)


def basic_block_fused(x, w1, sh1, w2, sh2, *, compute_dtype=jnp.bfloat16,
                      images_per_step=1):
    """Pallas call.  x: (N, H, W*C) lane-dense f32.  Returns same shape."""
    N, H, WC = x.shape
    Nb = images_per_step
    assert N % Nb == 0
    assert w1.shape == (3, WC, WC) and w2.shape == (3, WC, WC)

    return pl.pallas_call(
        _basic_block_kernel,
        out_shape=jax.ShapeDtypeStruct((N, H, WC), x.dtype),
        grid=(N // Nb,),
        in_specs=[
            pl.BlockSpec((Nb, H, WC), lambda n: (n, 0, 0)),   # x (lane-dense)
            pl.BlockSpec((3, WC, WC), lambda n: (0, 0, 0)),   # banded w1 (BN scale folded)
            pl.BlockSpec((1, WC), lambda n: (0, 0)),          # shift1 (tiled over W)
            pl.BlockSpec((3, WC, WC), lambda n: (0, 0, 0)),   # banded w2
            pl.BlockSpec((1, WC), lambda n: (0, 0)),          # shift2
        ],
        out_specs=pl.BlockSpec((Nb, H, WC), lambda n: (n, 0, 0)),
        scratch_shapes=[pltpu.VMEM((H + 2, WC), compute_dtype)],  # zero-halo padded rows
        compiler_params=pltpu.CompilerParams(
            dimension_semantics=("parallel",),
            vmem_limit_bytes=32 * 1024 * 1024),
    )(x, w1, sh1, w2, sh2)


# ---------------------------------------------------------------------------
# Wrapper-level weight folding
# ---------------------------------------------------------------------------
def fold_bn(gamma, beta, mean, var, eps=1e-5):
    scale = gamma / jnp.sqrt(var + eps)
    shift = beta - mean * scale
    return scale, shift                      # (C,), (C,)


def _band_conv_bn_weight(w_hwio, scale, W, compute_dtype):
    """Fold BN scale + kx taps + channels into a banded matrix per ky.

    Returns (3, W*Cin, W*Cout):  B[ky, p*Cin+ci, w*Cout+co] = scale[co] *
    K[ky, kx, ci, co] for p = w + kx - 1 (zero padding handled implicitly by
    dropping out-of-range taps at the W boundaries).
    """
    KH, KW, Cin, Cout = w_hwio.shape
    w = w_hwio * scale[None, None, None, :]                  # fold BN scale (f32)
    P = np.zeros((KW, W, W), np.float32)                     # placement: p == w + kx - 1
    for kx in range(KW):
        for wo in range(W):
            p = wo + kx - 1
            if 0 <= p < W:
                P[kx, p, wo] = 1.0
    B = jnp.einsum('kpw,ykio->ypiwo', jnp.asarray(P), w)     # (ky, p, ci, w, co)
    return B.reshape(KH, W * Cin, W * Cout).astype(compute_dtype)


def basic_block_forward(x_nchw, params, compute_dtype=jnp.bfloat16,
                        images_per_step=1):
    """BasicBlock.forward with stride=1, downsample=None.  Input/output: NCHW."""
    N, C, H, W = x_nchw.shape
    assert params["w1"].shape[-1] == C, "identity residual requires Cin == Cout"
    # NCHW -> NHWC -> lane-dense (N, H, W*C): same HBM bytes, free metadata reshape.
    x = jnp.transpose(x_nchw, (0, 2, 3, 1)).reshape(N, H, W * C)
    w1 = _band_conv_bn_weight(params["w1"], params["scale1"], W, compute_dtype)
    w2 = _band_conv_bn_weight(params["w2"], params["scale2"], W, compute_dtype)
    sh1 = jnp.tile(params["shift1"], W).reshape(1, W * C).astype(jnp.float32)
    sh2 = jnp.tile(params["shift2"], W).reshape(1, W * C).astype(jnp.float32)
    out = basic_block_fused(x, w1, sh1, w2, sh2, compute_dtype=compute_dtype,
                            images_per_step=images_per_step)
    return jnp.transpose(out.reshape(N, H, W, C), (0, 3, 1, 2))


# ---------------------------------------------------------------------------
# Plain-JAX f32 reference and test harness
# ---------------------------------------------------------------------------
def reference_forward(x_nchw, params):
    x = jnp.transpose(x_nchw, (0, 2, 3, 1))
    dn = jax.lax.conv_dimension_numbers(x.shape, params["w1"].shape,
                                        ("NHWC", "HWIO", "NHWC"))

    def conv(inp, w):
        return jax.lax.conv_general_dilated(inp, w, (1, 1), "SAME",
                                            dimension_numbers=dn)

    h = conv(x, params["w1"]) * params["scale1"] + params["shift1"]
    h = jnp.maximum(h, 0.0)
    o = conv(h, params["w2"]) * params["scale2"] + params["shift2"]
    o = jnp.maximum(o + x, 0.0)
    return jnp.transpose(o, (0, 3, 1, 2))


def init_params(key, channels):
    ks = jax.random.split(key, 10)
    fan_in = channels * 3 * 3
    std = (2.0 / fan_in) ** 0.5
    w1 = jax.random.normal(ks[0], (3, 3, channels, channels), jnp.float32) * std
    w2 = jax.random.normal(ks[1], (3, 3, channels, channels), jnp.float32) * std
    g1 = 1.0 + 0.1 * jax.random.normal(ks[2], (channels,), jnp.float32)
    b1 = 0.1 * jax.random.normal(ks[3], (channels,), jnp.float32)
    m1 = 0.1 * jax.random.normal(ks[4], (channels,), jnp.float32)
    v1 = jnp.abs(jax.random.normal(ks[5], (channels,), jnp.float32)) + 0.5
    g2 = 1.0 + 0.1 * jax.random.normal(ks[6], (channels,), jnp.float32)
    b2 = 0.1 * jax.random.normal(ks[7], (channels,), jnp.float32)
    m2 = 0.1 * jax.random.normal(ks[8], (channels,), jnp.float32)
    v2 = jnp.abs(jax.random.normal(ks[9], (channels,), jnp.float32)) + 0.5
    s1, sh1 = fold_bn(g1, b1, m1, v1)
    s2, sh2 = fold_bn(g2, b2, m2, v2)
    return {"w1": w1, "scale1": s1, "shift1": sh1,
            "w2": w2, "scale2": s2, "shift2": sh2}


if __name__ == "__main__":
    key = jax.random.PRNGKey(0)
    k_x, k_p = jax.random.split(key)

    # in_channels == out_channels, stride=1 (module defaults).  C=8, W=16 makes
    # the lane-dense row exactly 128 lanes wide.
    N, C, H, W = 2, 8, 16, 16
    x = jax.random.normal(k_x, (N, C, H, W), jnp.float32)   # PyTorch-style NCHW input
    params = init_params(k_p, C)

    out = jax.block_until_ready(basic_block_forward(x, params))
    ref = jax.block_until_ready(reference_forward(x, params))

    # bf16 MXU path vs f32 reference: loose-ish tolerance; real indexing bugs
    # would be O(1) off and still caught.
    np.testing.assert_allclose(np.asarray(out), np.asarray(ref), atol=1e-1, rtol=1e-1)
    assert out.shape == (N, C, H, W)
    print("KERNEL_OK")
</pallas_src>

<mosaic_0001>
module attributes {stable_mosaic.version = 11 : i64} {
  func.func @_basic_block_kernel(%arg0: i32, %arg1: memref<1x16x128xf32, #tpu.memory_space<vmem>>, %arg2: memref<3x128x128xbf16, #tpu.memory_space<vmem>>, %arg3: memref<1x128xf32, #tpu.memory_space<vmem>>, %arg4: memref<3x128x128xbf16, #tpu.memory_space<vmem>>, %arg5: memref<1x128xf32, #tpu.memory_space<vmem>>, %arg6: memref<1x16x128xf32, #tpu.memory_space<vmem>>, %arg7: memref<18x128xbf16, #tpu.memory_space<vmem>>) attributes {dimension_semantics = [#tpu.dimension_semantics<parallel>], iteration_bounds = array<i64: 2>, scalar_prefetch = 0 : i64, scratch_operands = 1 : i64, tpu.core_type = #tpu.core_type<tc>, window_params = [{transform_indices = @transform_0, window_bounds = array<i64: 1, 16, 128>}, {pipeline_mode = #tpu.pipeline_mode<synchronous>, transform_indices = @transform_1, window_bounds = array<i64: 3, 128, 128>}, {pipeline_mode = #tpu.pipeline_mode<synchronous>, transform_indices = @transform_2, window_bounds = array<i64: 1, 128>}, {pipeline_mode = #tpu.pipeline_mode<synchronous>, transform_indices = @transform_3, window_bounds = array<i64: 3, 128, 128>}, {pipeline_mode = #tpu.pipeline_mode<synchronous>, transform_indices = @transform_4, window_bounds = array<i64: 1, 128>}, {transform_indices = @transform_5, window_bounds = array<i64: 1, 16, 128>}]} {
    %cst = arith.constant 0.000000e+00 : bf16
    %0 = vector.broadcast %cst : bf16 to vector<1x128xbf16>
    %c0 = arith.constant 0 : index
    %c0_0 = arith.constant 0 : index
    %1 = vector.load %arg7[%c0, %c0_0] : memref<18x128xbf16, #tpu.memory_space<vmem>>, vector<1x128xbf16>
    tpu.vector_store %arg7[%c0, %c0_0], %0 {strides = array<i32>} : memref<18x128xbf16, #tpu.memory_space<vmem>>, vector<1x128xbf16>,
    %cst_1 = arith.constant 0.000000e+00 : bf16
    %2 = vector.broadcast %cst_1 : bf16 to vector<1x128xbf16>
    %c17 = arith.constant 17 : index
    %c0_2 = arith.constant 0 : index
    %3 = vector.load %arg7[%c17, %c0_2] : memref<18x128xbf16, #tpu.memory_space<vmem>>, vector<1x128xbf16>
    tpu.vector_store %arg7[%c17, %c0_2], %2 {strides = array<i32>} : memref<18x128xbf16, #tpu.memory_space<vmem>>, vector<1x128xbf16>,
    %c0_3 = arith.constant 0 : index
    %c0_4 = arith.constant 0 : index
    %c0_5 = arith.constant 0 : index
    %4 = vector.load %arg1[%c0_3, %c0_4, %c0_5] : memref<1x16x128xf32, #tpu.memory_space<vmem>>, vector<1x16x128xf32>
    %5 = vector.shape_cast %4 : vector<1x16x128xf32> to vector<16x128xf32>
    %6 = arith.truncf %5 : vector<16x128xf32> to vector<16x128xbf16>
    %c1 = arith.constant 1 : index
    %c0_6 = arith.constant 0 : index
    %7 = vector.load %arg7[%c1, %c0_6] : memref<18x128xbf16, #tpu.memory_space<vmem>>, vector<16x128xbf16>
    tpu.vector_store %arg7[%c1, %c0_6], %6 {strides = array<i32>} : memref<18x128xbf16, #tpu.memory_space<vmem>>, vector<16x128xbf16>,
    %cst_7 = arith.constant 0.000000e+00 : f32
    %8 = vector.broadcast %cst_7 : f32 to vector<16x128xf32>
    %c0_8 = arith.constant 0 : index
    %c0_9 = arith.constant 0 : index
    %9 = vector.load %arg7[%c0_8, %c0_9] : memref<18x128xbf16, #tpu.memory_space<vmem>>, vector<16x128xbf16>
    %c0_10 = arith.constant 0 : index
    %c0_11 = arith.constant 0 : index
    %c0_12 = arith.constant 0 : index
    %10 = vector.load %arg2[%c0_10, %c0_11, %c0_12] : memref<3x128x128xbf16, #tpu.memory_space<vmem>>, vector<1x128x128xbf16>
    %11 = vector.shape_cast %10 : vector<1x128x128xbf16> to vector<128x128xbf16>
    %cst_13 = arith.constant dense<0.000000e+00> : vector<16x128xf32>
    %12 = tpu.matmul %9, %11, %cst_13 {dimension_numbers = #tpu.dot_dimension_numbers<[1], [0], [0], [1], [0, 0, 1, 1], [], []>} : vector<16x128xbf16>, vector<128x128xbf16>, vector<16x128xf32> -> vector<16x128xf32>
    %13 = arith.addf %8, %12 : vector<16x128xf32>
    %c1_14 = arith.constant 1 : index
    %c0_15 = arith.constant 0 : index
    %14 = vector.load %arg7[%c1_14, %c0_15] : memref<18x128xbf16, #tpu.memory_space<vmem>>, vector<16x128xbf16>
    %c1_16 = arith.constant 1 : index
    %c0_17 = arith.constant 0 : index
    %c0_18 = arith.constant 0 : index
    %15 = vector.load %arg2[%c1_16, %c0_17, %c0_18] : memref<3x128x128xbf16, #tpu.memory_space<vmem>>, vector<1x128x128xbf16>
    %16 = vector.shape_cast %15 : vector<1x128x128xbf16> to vector<128x128xbf16>
    %cst_19 = arith.constant dense<0.000000e+00> : vector<16x128xf32>
    %17 = tpu.matmul %14, %16, %cst_19 {dimension_numbers = #tpu.dot_dimension_numbers<[1], [0], [0], [1], [0, 0, 1, 1], [], []>} : vector<16x128xbf16>, vector<128x128xbf16>, vector<16x128xf32> -> vector<16x128xf32>
    %18 = arith.addf %13, %17 : vector<16x128xf32>
    %c2 = arith.constant 2 : index
    %c0_20 = arith.constant 0 : index
    %19 = vector.load %arg7[%c2, %c0_20] : memref<18x128xbf16, #tpu.memory_space<vmem>>, vector<16x128xbf16>
    %c2_21 = arith.constant 2 : index
    %c0_22 = arith.constant 0 : index
    %c0_23 = arith.constant 0 : index
    %20 = vector.load %arg2[%c2_21, %c0_22, %c0_23] : memref<3x128x128xbf16, #tpu.memory_space<vmem>>, vector<1x128x128xbf16>
    %21 = vector.shape_cast %20 : vector<1x128x128xbf16> to vector<128x128xbf16>
    %cst_24 = arith.constant dense<0.000000e+00> : vector<16x128xf32>
    %22 = tpu.matmul %19, %21, %cst_24 {dimension_numbers = #tpu.dot_dimension_numbers<[1], [0], [0], [1], [0, 0, 1, 1], [], []>} : vector<16x128xbf16>, vector<128x128xbf16>, vector<16x128xf32> -> vector<16x128xf32>
    %23 = arith.addf %18, %22 : vector<16x128xf32>
    %c0_25 = arith.constant 0 : index
    %c0_26 = arith.constant 0 : index
    %24 = vector.load %arg3[%c0_25, %c0_26] : memref<1x128xf32, #tpu.memory_space<vmem>>, vector<1x128xf32>
    %25 = vector.broadcast %24 : vector<1x128xf32> to vector<16x128xf32>
    %26 = arith.addf %23, %25 : vector<16x128xf32>
    %cst_27 = arith.constant 0.000000e+00 : f32
    %27 = vector.broadcast %cst_27 : f32 to vector<16x128xf32>
    %28 = arith.maximumf %26, %27 : vector<16x128xf32>
    %29 = arith.truncf %28 : vector<16x128xf32> to vector<16x128xbf16>
    %c1_28 = arith.constant 1 : index
    %c0_29 = arith.constant 0 : index
    %30 = vector.load %arg7[%c1_28, %c0_29] : memref<18x128xbf16, #tpu.memory_space<vmem>>, vector<16x128xbf16>
    tpu.vector_store %arg7[%c1_28, %c0_29], %29 {strides = array<i32>} : memref<18x128xbf16, #tpu.memory_space<vmem>>, vector<16x128xbf16>,
    %cst_30 = arith.constant 0.000000e+00 : f32
    %31 = vector.broadcast %cst_30 : f32 to vector<16x128xf32>
    %c0_31 = arith.constant 0 : index
    %c0_32 = arith.constant 0 : index
    %32 = vector.load %arg7[%c0_31, %c0_32] : memref<18x128xbf16, #tpu.memory_space<vmem>>, vector<16x128xbf16>
    %c0_33 = arith.constant 0 : index
    %c0_34 = arith.constant 0 : index
    %c0_35 = arith.constant 0 : index
    %33 = vector.load %arg4[%c0_33, %c0_34, %c0_35] : memref<3x128x128xbf16, #tpu.memory_space<vmem>>, vector<1x128x128xbf16>
    %34 = vector.shape_cast %33 : vector<1x128x128xbf16> to vector<128x128xbf16>
    %cst_36 = arith.constant dense<0.000000e+00> : vector<16x128xf32>
    %35 = tpu.matmul %32, %34, %cst_36 {dimension_numbers = #tpu.dot_dimension_numbers<[1], [0], [0], [1], [0, 0, 1, 1], [], []>} : vector<16x128xbf16>, vector<128x128xbf16>, vector<16x128xf32> -> vector<16x128xf32>
    %36 = arith.addf %31, %35 : vector<16x128xf32>
    %c1_37 = arith.constant 1 : index
    %c0_38 = arith.constant 0 : index
    %37 = vector.load %arg7[%c1_37, %c0_38] : memref<18x128xbf16, #tpu.memory_space<vmem>>, vector<16x128xbf16>
    %c1_39 = arith.constant 1 : index
    %c0_40 = arith.constant 0 : index
    %c0_41 = arith.constant 0 : index
    %38 = vector.load %arg4[%c1_39, %c0_40, %c0_41] : memref<3x128x128xbf16, #tpu.memory_space<vmem>>, vector<1x128x128xbf16>
    %39 = vector.shape_cast %38 : vector<1x128x128xbf16> to vector<128x128xbf16>
    %cst_42 = arith.constant dense<0.000000e+00> : vector<16x128xf32>
    %40 = tpu.matmul %37, %39, %cst_42 {dimension_numbers = #tpu.dot_dimension_numbers<[1], [0], [0], [1], [0, 0, 1, 1], [], []>} : vector<16x128xbf16>, vector<128x128xbf16>, vector<16x128xf32> -> vector<16x128xf32>
    %41 = arith.addf %36, %40 : vector<16x128xf32>
    %c2_43 = arith.constant 2 : index
    %c0_44 = arith.constant 0 : index
    %42 = vector.load %arg7[%c2_43, %c0_44] : memref<18x128xbf16, #tpu.memory_space<vmem>>, vector<16x128xbf16>
    %c2_45 = arith.constant 2 : index
    %c0_46 = arith.constant 0 : index
    %c0_47 = arith.constant 0 : index
    %43 = vector.load %arg4[%c2_45, %c0_46, %c0_47] : memref<3x128x128xbf16, #tpu.memory_space<vmem>>, vector<1x128x128xbf16>
    %44 = vector.shape_cast %43 : vector<1x128x128xbf16> to vector<128x128xbf16>
    %cst_48 = arith.constant dense<0.000000e+00> : vector<16x128xf32>
    %45 = tpu.matmul %42, %44, %cst_48 {dimension_numbers = #tpu.dot_dimension_numbers<[1], [0], [0], [1], [0, 0, 1, 1], [], []>} : vector<16x128xbf16>, vector<128x128xbf16>, vector<16x128xf32> -> vector<16x128xf32>
    %46 = arith.addf %41, %45 : vector<16x128xf32>
    %c0_49 = arith.constant 0 : index
    %c0_50 = arith.constant 0 : index
    %47 = vector.load %arg5[%c0_49, %c0_50] : memref<1x128xf32, #tpu.memory_space<vmem>>, vector<1x128xf32>
    %48 = vector.broadcast %47 : vector<1x128xf32> to vector<16x128xf32>
    %49 = arith.addf %46, %48 : vector<16x128xf32>
    %50 = arith.addf %49, %5 : vector<16x128xf32>
    %cst_51 = arith.constant 0.000000e+00 : f32
    %51 = vector.broadcast %cst_51 : f32 to vector<16x128xf32>
    %52 = arith.maximumf %50, %51 : vector<16x128xf32>
    %c0_52 = arith.constant 0 : index
    %c0_53 = arith.constant 0 : index
    %c0_54 = arith.constant 0 : index
    %53 = vector.load %arg6[%c0_52, %c0_53, %c0_54] : memref<1x16x128xf32, #tpu.memory_space<vmem>>, vector<1x16x128xf32>
    %54 = vector.shape_cast %53 : vector<1x16x128xf32> to vector<16x128xf32>
    %55 = vector.shape_cast %52 : vector<16x128xf32> to vector<1x16x128xf32>
    tpu.vector_store %arg6[%c0_52, %c0_53, %c0_54], %55 {strides = array<i32>} : memref<1x16x128xf32, #tpu.memory_space<vmem>>, vector<1x16x128xf32>,
    return
  }
  func.func @transform_0(%arg0: i32) -> (i32, i32, i32) {
    %c0_i32 = arith.constant 0 : i32
    %c0_i32_0 = arith.constant 0 : i32
    %c0_i32_1 = arith.constant 0 : i32
    return %arg0, %c0_i32, %c0_i32_0 : i32, i32, i32
  }
  func.func @transform_1(%arg0: i32) -> (i32, i32, i32) {
    %c0_i32 = arith.constant 0 : i32
    %c0_i32_0 = arith.constant 0 : i32
    %c0_i32_1 = arith.constant 0 : i32
    %c0_i32_2 = arith.constant 0 : i32
    return %c0_i32, %c0_i32_0, %c0_i32_1 : i32, i32, i32
  }
  func.func @transform_2(%arg0: i32) -> (i32, i32) {
    %c0_i32 = arith.constant 0 : i32
    %c0_i32_0 = arith.constant 0 : i32
    %c0_i32_1 = arith.constant 0 : i32
    return %c0_i32, %c0_i32_0 : i32, i32
  }
  func.func @transform_3(%arg0: i32) -> (i32, i32, i32) {
    %c0_i32 = arith.constant 0 : i32
    %c0_i32_0 = arith.constant 0 : i32
    %c0_i32_1 = arith.constant 0 : i32
    %c0_i32_2 = arith.constant 0 : i32
    return %c0_i32, %c0_i32_0, %c0_i32_1 : i32, i32, i32
  }
  func.func @transform_4(%arg0: i32) -> (i32, i32) {
    %c0_i32 = arith.constant 0 : i32
    %c0_i32_0 = arith.constant 0 : i32
    %c0_i32_1 = arith.constant 0 : i32
    return %c0_i32, %c0_i32_0 : i32, i32
  }
  func.func @transform_5(%arg0: i32) -> (i32, i32, i32) {
    %c0_i32 = arith.constant 0 : i32
    %c0_i32_0 = arith.constant 0 : i32
    %c0_i32_1 = arith.constant 0 : i32
    return %arg0, %c0_i32, %c0_i32_0 : i32, i32, i32
  }
}

</mosaic_0001>

<llo_original>
// kernel: tpu_custom_call.1
$region0: #{tpu_custom_call.1}
  #allocation0 [shape = 'u32[]', space=smem, size = 0x4, offset = 0x4, fixed_abs, tag = 'smem constant byte address 0x4 - core index']
  #allocation1 [shape = 'u32[144,128]{1,0:T(1,128)}', space=vmem, size = 0x12000, scoped, tag = 'internal scratch']
  #allocation2 [shape = 'bf16[18,128]{1,0:T(8,128)(2,1)}', space=vmem, size = 0x1800, scoped, tag = 'scratch operand']
  %s0 = inlined_call_operand.hbm [shape: f32[2,16,128], index: 0, kind: input, shape index: {}]
  %s1 = inlined_call_operand.hbm [shape: bf16[3,128,128], index: 1, kind: input, shape index: {}]
  %s2 = inlined_call_operand.vmem [shape: f32[1,128], index: 2, kind: input, shape index: {}]
  %s3 = inlined_call_operand.hbm [shape: bf16[3,128,128], index: 3, kind: input, shape index: {}]
  %s4 = inlined_call_operand.vmem [shape: f32[1,128], index: 4, kind: input, shape index: {}]
  %s5 = inlined_call_operand.hbm [shape: f32[2,16,128], index: 5, kind: output, shape index: {}]
  %s6 = sld [smem:[#allocation0]]
  $region65: #{tpu_custom_call.1} parent=0
    _
  %s8 = ssub.s32 1, %s6
  %s9 = scalar_select 0, %s8, %s6
  $region1: #{tpu_custom_call.1} parent=0
    #allocation3 [shape = 'u8[16384]{0}', space=vmem, size = 0x4000, scoped, tag = 'input window, operand 0']
    #allocation4 [shape = 's32[2]{0}', space=sflag, size = 0x8, scoped, tag = 'scoped memory for tpu_custom_call.1']
    #allocation5 [shape = 's32[2]{0}', space=sflag, size = 0x8, scoped, tag = 'scoped memory for tpu_custom_call.1']
    #allocation6 [shape = 'u8[98304]{0}', space=vmem, size = 0x18000, scoped, tag = 'input window, operand 1, single buffered']
    #allocation7 [shape = 's32[1]{0}', space=sflag, size = 0x4, scoped, tag = 'scoped memory for tpu_custom_call.1']
    #allocation8 [shape = 'u8[98304]{0}', space=vmem, size = 0x18000, scoped, tag = 'input window, operand 3, single buffered']
    #allocation9 [shape = 'u8[16384]{0}', space=vmem, size = 0x4000, scoped, tag = 'output window, operand 0']
    %10 = vsyncpa [#allocation4], 0
    %s11 = scalar_lea.sflag [#allocation4], 1
    %12 = vsyncpa %s11, 0
    %13 = vsyncpa [#allocation7], 0
    %14 = vsyncpa [#allocation5], 0
    %s15 = scalar_lea.sflag [#allocation5], 1
    %16 = vsyncpa %s15, 0
    loop: start=0, step=1, limit=4
    $region2: #{tpu_custom_call.1} parent=1 // loop_pre_header
      _
    $region3: #{tpu_custom_call.1} parent=1 // loop_header
      %s18 = sphi 0, %s22
      %p19 = scmp.ge.s32.totalorder %s18, 4
      %s28 = sphi 0, %s30
      %s31 = sphi 0, %s28
      %s32 = sphi 0, %s31
      %s48 = sphi 0, %s32
      %s52 = sphi 0, %s52
      %s54 = sphi 0, %s52
      %s55 = sphi 0, %s54
      %s69 = sphi 0, %s55
      %s73 = sphi 0, %s73
      %s75 = sphi 0, %s73
      %s76 = sphi 0, %s75
      %s90 = sphi 0, %s76
      %s94 = sphi 0, %s94
      %s96 = sphi 0, %s94
      %s97 = sphi 0, %s96
      %s111 = sphi 0, %s97
      %s115 = sphi 0, %s115
      %s117 = sphi 0, %s115
      %s118 = sphi 0, %s117
      %s132 = sphi 0, %s118
      %s138 = sphi 0, %s140
      %s141 = sphi 0, %s138
      %s142 = sphi 0, %s141
      %s158 = sphi 0, %s142
    $region4: #{tpu_custom_call.1} parent=1 // loop_header_branch
      %21 = sbr.rel (%p19) target = $region8
    $region5: #{tpu_custom_call.1} parent=1 // loop_body
      %s23 = ssub.s32 %s18, 1
      %s24 = ssub.s32 %s18, 2
      %s25 = sadd.s32 %s18, 1
      %s26 = ssub.s32 %s18, %s25
      %p27 = scmp.eq.s32.totalorder %s26, 0
      %s29 = sadd.s32 %s28, 1
      %s30 = scalar_select %p27, %s28, %s29
      %p33 = pneg %p27
      %p34 = scmp.eq.s32.totalorder %s18, 1
      %p35 = por %p33, %p34
      %p36 = scmp.ne.s32.totalorder %s28, %s31
      %p37 = scmp.eq.s32.totalorder %s18, 0
      %p38 = por %p36, %p37
      %p39 = scmp.ne.s32.totalorder %s28, %s31
      %p40 = scmp.eq.s32.totalorder %s23, 1
      %p41 = por %p39, %p40
      %p42 = scmp.ne.s32.totalorder %s31, %s32
      %p43 = scmp.eq.s32.totalorder %s23, 0
      %p44 = por %p42, %p43
      %p45 = scmp.ne.s32.totalorder %s31, %s32
      %p46 = scmp.eq.s32.totalorder %s24, 1
      %p47 = por %p45, %p46
      %p49 = scmp.ne.s32.totalorder %s32, %s48
      %p50 = scmp.eq.s32.totalorder %s24, 0
      %p51 = por %p49, %p50
      %s53 = sadd.s32 %s52, 1
      %p56 = scmp.eq.s32.totalorder %s18, 1
      %p57 = scmp.ne.s32.totalorder %s52, %s54
      %p58 = scmp.eq.s32.totalorder %s18, 0
      %p59 = por %p57, %p58
      %p60 = scmp.ne.s32.totalorder %s52, %s54
      %p61 = scmp.eq.s32.totalorder %s23, 1
      %p62 = por %p60, %p61
      %p63 = scmp.ne.s32.totalorder %s54, %s55
      %p64 = scmp.eq.s32.totalorder %s23, 0
      %p65 = por %p63, %p64
      %p66 = scmp.ne.s32.totalorder %s54, %s55
      %p67 = scmp.eq.s32.totalorder %s24, 1
      %p68 = por %p66, %p67
      %p70 = scmp.ne.s32.totalorder %s55, %s69
      %p71 = scmp.eq.s32.totalorder %s24, 0
      %p72 = por %p70, %p71
      %s74 = sadd.s32 %s73, 1
      %p77 = scmp.eq.s32.totalorder %s18, 1
      %p78 = scmp.ne.s32.totalorder %s73, %s75
      %p79 = scmp.eq.s32.totalorder %s18, 0
      %p80 = por %p78, %p79
      %p81 = scmp.ne.s32.totalorder %s73, %s75
      %p82 = scmp.eq.s32.totalorder %s23, 1
      %p83 = por %p81, %p82
      %p84 = scmp.ne.s32.totalorder %s75, %s76
      %p85 = scmp.eq.s32.totalorder %s23, 0
      %p86 = por %p84, %p85
      %p87 = scmp.ne.s32.totalorder %s75, %s76
      %p88 = scmp.eq.s32.totalorder %s24, 1
      %p89 = por %p87, %p88
      %p91 = scmp.ne.s32.totalorder %s76, %s90
      %p92 = scmp.eq.s32.totalorder %s24, 0
      %p93 = por %p91, %p92
      %s95 = sadd.s32 %s94, 1
      %p98 = scmp.eq.s32.totalorder %s18, 1
      %p99 = scmp.ne.s32.totalorder %s94, %s96
      %p100 = scmp.eq.s32.totalorder %s18, 0
      %p101 = por %p99, %p100
      %p102 = scmp.ne.s32.totalorder %s94, %s96
      %p103 = scmp.eq.s32.totalorder %s23, 1
      %p104 = por %p102, %p103
      %p105 = scmp.ne.s32.totalorder %s96, %s97
      %p106 = scmp.eq.s32.totalorder %s23, 0
      %p107 = por %p105, %p106
      %p108 = scmp.ne.s32.totalorder %s96, %s97
      %p109 = scmp.eq.s32.totalorder %s24, 1
      %p110 = por %p108, %p109
      %p112 = scmp.ne.s32.totalorder %s97, %s111
      %p113 = scmp.eq.s32.totalorder %s24, 0
      %p114 = por %p112, %p113
      %s116 = sadd.s32 %s115, 1
      %p119 = scmp.eq.s32.totalorder %s18, 1
      %p120 = scmp.ne.s32.totalorder %s115, %s117
      %p121 = scmp.eq.s32.totalorder %s18, 0
      %p122 = por %p120, %p121
      %p123 = scmp.ne.s32.totalorder %s115, %s117
      %p124 = scmp.eq.s32.totalorder %s23, 1
      %p125 = por %p123, %p124
      %p126 = scmp.ne.s32.totalorder %s117, %s118
      %p127 = scmp.eq.s32.totalorder %s23, 0
      %p128 = por %p126, %p127
      %p129 = scmp.ne.s32.totalorder %s117, %s118
      %p130 = scmp.eq.s32.totalorder %s24, 1
      %p131 = por %p129, %p130
      %p133 = scmp.ne.s32.totalorder %s118, %s132
      %p134 = scmp.eq.s32.totalorder %s24, 0
      %p135 = por %p133, %p134
      %s136 = ssub.s32 %s18, %s25
      %p137 = scmp.eq.s32.totalorder %s136, 0
      %s139 = sadd.s32 %s138, 1
      %s140 = scalar_select %p137, %s138, %s139
      %p143 = pneg %p137
      %p144 = scmp.eq.s32.totalorder %s18, 1
      %p145 = por %p143, %p144
      %p146 = scmp.ne.s32.totalorder %s138, %s141
      %p147 = scmp.eq.s32.totalorder %s18, 0
      %p148 = por %p146, %p147
      %p149 = scmp.ne.s32.totalorder %s138, %s141
      %p150 = scmp.eq.s32.totalorder %s23, 1
      %p151 = por %p149, %p150
      %p152 = scmp.ne.s32.totalorder %s141, %s142
      %p153 = scmp.eq.s32.totalorder %s23, 0
      %p154 = por %p152, %p153
      %p155 = scmp.ne.s32.totalorder %s141, %s142
      %p156 = scmp.eq.s32.totalorder %s24, 1
      %p157 = por %p155, %p156
      %p159 = scmp.ne.s32.totalorder %s142, %s158
      %p160 = scmp.eq.s32.totalorder %s24, 0
      %p161 = por %p159, %p160
      %p162 = scmp.le.s32.totalorder 1, %s18
      %p163 = scmp.lt.s32.totalorder %s18, 3
      %p164 = pnand %p162, %p163
      %p165 = pneg %p164
      // Predicated region
      $region9: #{tpu_custom_call.1} parent=5 // pred_check
        _
      $region10: #{tpu_custom_call.1} parent=5 // pred_check_branch
        %167 = sbr.rel (%p164) target = $region12
      $region11: #{tpu_custom_call.1} parent=5 // pred_region
        %s168 = ssub.s32 %s18, 1
        // Predicated region
        $region13: #{tpu_custom_call.1} parent=11 // pred_check
          %p169 = pneg %p65
        $region14: #{tpu_custom_call.1} parent=11 // pred_check_branch
          %171 = sbr.rel (%p169) target = $region16
        $region15: #{tpu_custom_call.1} parent=11 // pred_region
          %s173 = ssub.s32 3072, 3072
          %174 = vsyncadd [#allocation7], %s173
          %s175 = sshll.u32 [#allocation6], 4
          %s176 = int_to_ptr.vmem [resolvable:$true] %s175
          %181 = dma.hbm_to_vmem [thread:$0]  %s1, 3072, %s176, [#allocation7], 64, 64, 4
        $region16: #{tpu_custom_call.1} parent=11 // pred_fallthru
          _
        // Predicated region
        $region17: #{tpu_custom_call.1} parent=11 // pred_check
          %p182 = pneg %p86
        $region18: #{tpu_custom_call.1} parent=11 // pred_check_branch
          %184 = sbr.rel (%p182) target = $region20
        $region19: #{tpu_custom_call.1} parent=11 // pred_region
          _
        $region20: #{tpu_custom_call.1} parent=11 // pred_fallthru
          _
        // Predicated region
        $region21: #{tpu_custom_call.1} parent=11 // pred_check
          %p185 = pneg %p107
        $region22: #{tpu_custom_call.1} parent=11 // pred_check_branch
          %187 = sbr.rel (%p185) target = $region24
        $region23: #{tpu_custom_call.1} parent=11 // pred_region
          %s189 = ssub.s32 3072, 3072
          %190 = vsyncadd [#allocation7], %s189
          %s191 = sshll.u32 [#allocation8], 4
          %s192 = int_to_ptr.vmem [resolvable:$true] %s191
          %197 = dma.hbm_to_vmem [thread:$0]  %s3, 3072, %s192, [#allocation7], 64, 64, 4
        $region24: #{tpu_custom_call.1} parent=11 // pred_fallthru
          _
        // Predicated region
        $region25: #{tpu_custom_call.1} parent=11 // pred_check
          %p198 = pneg %p128
        $region26: #{tpu_custom_call.1} parent=11 // pred_check_branch
          %200 = sbr.rel (%p198) target = $region28
        $region27: #{tpu_custom_call.1} parent=11 // pred_region
          _
        $region28: #{tpu_custom_call.1} parent=11 // pred_fallthru
          _
      $region12: #{tpu_custom_call.1} parent=5 // pred_fallthru
        _
      %p201 = scmp.lt.s32.totalorder %s18, 2
      // Predicated region
      $region29: #{tpu_custom_call.1} parent=5 // pred_check
        %p202 = pneg %p201
      $region30: #{tpu_custom_call.1} parent=5 // pred_check_branch
        %204 = sbr.rel (%p202) target = $region32
      $region31: #{tpu_custom_call.1} parent=5 // pred_region
        // Predicated region
        $region33: #{tpu_custom_call.1} parent=31 // pred_check
          %p205 = pneg %p38
        $region34: #{tpu_custom_call.1} parent=31 // pred_check_branch
          %207 = sbr.rel (%p205) target = $region36
        $region35: #{tpu_custom_call.1} parent=31 // pred_region
          %s208 = sand.u32 %s28, 1
          %s209 = scalar_lea.sflag [#allocation4], %s208
          %s210 = sand.u32 %s28, 1
          %s211 = smul.addr %s210, 16
          %s212 = scalar_lea.vmem [#allocation3], %s211
          %s214 = ssub.s32 256, 256
          %215 = vsyncadd %s209, %s214
          %s216 = smul.addr %s18, 2
          %s217 = smul.addr %s216, 128
          %s218 = scalar_lea.hbm %s0, %s217
          %s219 = sshll.u32 %s212, 4
          %s220 = int_to_ptr.vmem [resolvable:$true] %s219
          %225 = dma.hbm_to_vmem [thread:$0]  %s218, 256, %s220, %s209, 128, 128, 8
        $region36: #{tpu_custom_call.1} parent=31 // pred_fallthru
          _
      $region32: #{tpu_custom_call.1} parent=5 // pred_fallthru
        _
      %p226 = scmp.le.s32.totalorder 1, %s18
      %p227 = scmp.lt.s32.totalorder %s18, 3
      %p228 = pnand %p226, %p227
      %p229 = pneg %p228
      // Predicated region
      $region37: #{tpu_custom_call.1} parent=5 // pred_check
        _
      $region38: #{tpu_custom_call.1} parent=5 // pred_check_branch
        %231 = sbr.rel (%p228) target = $region40
      $region39: #{tpu_custom_call.1} parent=5 // pred_region
        %s232 = ssub.s32 %s18, 1
        %s233 = sand.u32 %s31, 1
        %s234 = scalar_lea.sflag [#allocation4], %s233
        %s235 = sand.u32 %s31, 1
        %s236 = smul.addr %s235, 16
        %s237 = scalar_lea.vmem [#allocation3], %s236
        // Predicated region
        $region41: #{tpu_custom_call.1} parent=39 // pred_check
          %p238 = pneg %p44
        $region42: #{tpu_custom_call.1} parent=39 // pred_check_branch
          %240 = sbr.rel (%p238) target = $region44
        $region43: #{tpu_custom_call.1} parent=39 // pred_region
          %241 = dma.done %s234, 256
        $region44: #{tpu_custom_call.1} parent=39 // pred_fallthru
          _
        // Predicated region
        $region45: #{tpu_custom_call.1} parent=39 // pred_check
          %p242 = pneg %p65
        $region46: #{tpu_custom_call.1} parent=39 // pred_check_branch
          %244 = sbr.rel (%p242) target = $region48
        $region47: #{tpu_custom_call.1} parent=39 // pred_region
          %245 = dma.done [#allocation7], 3072
        $region48: #{tpu_custom_call.1} parent=39 // pred_fallthru
          _
        // Predicated region
        $region49: #{tpu_custom_call.1} parent=39 // pred_check
          %p246 = pneg %p107
        $region50: #{tpu_custom_call.1} parent=39 // pred_check_branch
          %248 = sbr.rel (%p246) target = $region52
        $region51: #{tpu_custom_call.1} parent=39 // pred_region
          %249 = dma.done [#allocation7], 3072
        $region52: #{tpu_custom_call.1} parent=39 // pred_fallthru
          _
        %s250 = sand.u32 %s31, 1
        %s251 = scalar_lea.sflag [#allocation4], %s250
        %s252 = sand.u32 %s31, 1
        %s253 = smul.addr %s252, 16
        %s254 = scalar_lea.vmem [#allocation3], %s253
        %p255 = pneg %p44
        %p256 = pneg %p41
        %p257 = pneg %p65
        %p258 = pneg %p62
        %p259 = pneg %p86
        %p260 = pneg %p83
        %p261 = pneg %p107
        %p262 = pneg %p104
        %p263 = pneg %p128
        %p264 = pneg %p125
        %p265 = pneg %p154
        %p266 = pneg %p151
        %s267 = sand.u32 %s141, 1
        %s268 = scalar_lea.sflag [#allocation5], %s267
        %s269 = sand.u32 %s141, 1
        %s270 = smul.addr %s269, 16
        %s271 = scalar_lea.vmem [#allocation9], %s270
        %vm273 = vcmask 1040384
        %vm274 = vsmask.f32 256
        %vm275 = vmand %vm273, %vm274
        %v276 = vld [vmem:[#allocation2] sm:$0x1]
        %v277 = vsel %vm275, 0, %v276
        %278 = vst [vmem:[#allocation2] sm:$0x1] %v277
        %vm279 = vsmask.f32 7938
        %vm280 = vmand %vm273, %vm279
        %v281 = vld [vmem:[#allocation2 + $0x8] sm:$0x1]
        %v282 = vsel %vm280, 0, %v281
        %283 = vst [vmem:[#allocation2 + $0x8] sm:$0x1] %v282
        %v284 = vld [vmem:[%s237] sm:$0xff]
        %v285 = vld [vmem:[%s237 + $0x8] sm:$0xff]
        %v286 = vpack.c.bf16 %v285, %v284
        %v288 = vunpack.c.l.b16 %v286
        %v289 = vunpack.c.h.b16 %v286
        %v290 = vpack.c.b16 %v288, %v288
        %v291 = vpack.c.b16 %v289, %v289
        %vm292 = vsmask.f32 4368
        %vm293 = vmor %vm274, %vm292
        %v295 = vshrl.u32 %v290, 16
        %v297 = vrot.slane %v295, 7
        %v298 = vshll.u32 %v290, 16
        %v300 = vor.u32 %v297, %v298
        %v301 = vrot.slane %v297, 4
        %v303 = vshrl.u32 %v291, 16
        %v305 = vrot.slane %v303, 7
        %v306 = vshll.u32 %v291, 16
        %v308 = vor.u32 %v305, %v306
        %v309 = vsel %vm293, %v301, %v308
        %v310 = vrot.slane %v305, 4
        %vm314 = vcmask 1043456
        %vm315 = vmand %vm314, %vm279
        %v316 = vld [vmem:[#allocation2] sm:$0xf]
        %v317 = vsel %vm315, %v300, %v316
        %318 = vst [vmem:[#allocation2] sm:$0xf] %v317
        %319 = vst [vmem:[#allocation2 + $0x4] sm:$0xf] %v309
        %v320 = vld [vmem:[#allocation2 + $0x8] sm:$0x1]
        %v321 = vsel %vm275, %v310, %v320
        %322 = vst [vmem:[#allocation2 + $0x8] sm:$0x1] %v321
        %v323 = vld [vmem:[#allocation2] sm:$0xf]
        %v324 = vld [vmem:[#allocation2 + $0x4] sm:$0xf]
        %v325 = vld [vmem:[#allocation6] sm:$0xf]
        %v326 = vld [vmem:[#allocation6 + $0x4] sm:$0xf]
        %v327 = vld [vmem:[#allocation6 + $0x8] sm:$0xf]
        %v328 = vld [vmem:[#allocation6 + $0xc] sm:$0xf]
        %v329 = vld [vmem:[#allocation6 + $0x10] sm:$0xf]
        %v330 = vld [vmem:[#allocation6 + $0x14] sm:$0xf]
        %v331 = vld [vmem:[#allocation6 + $0x18] sm:$0xf]
        %v332 = vld [vmem:[#allocation6 + $0x1c] sm:$0xf]
        %v333 = vld [vmem:[#allocation6 + $0x20] sm:$0xf]
        %v334 = vld [vmem:[#allocation6 + $0x24] sm:$0xf]
        %v335 = vld [vmem:[#allocation6 + $0x28] sm:$0xf]
        %v336 = vld [vmem:[#allocation6 + $0x2c] sm:$0xf]
        %v337 = vld [vmem:[#allocation6 + $0x30] sm:$0xf]
        %v338 = vld [vmem:[#allocation6 + $0x34] sm:$0xf]
        %v339 = vld [vmem:[#allocation6 + $0x38] sm:$0xf]
        %v340 = vld [vmem:[#allocation6 + $0x3c] sm:$0xf]
        %v341 = vld [vmem:[#allocation2 + $0x8] sm:$0x1]
        %s342 = scalar_lea.vmem [#allocation6], 64
        %v343 = vld [vmem:[%s342] sm:$0xf]
        %v344 = vld [vmem:[%s342 + $0x4] sm:$0xf]
        %v345 = vld [vmem:[%s342 + $0x8] sm:$0xf]
        %v346 = vld [vmem:[%s342 + $0xc] sm:$0xf]
        %v347 = vld [vmem:[%s342 + $0x10] sm:$0xf]
        %v348 = vld [vmem:[%s342 + $0x14] sm:$0xf]
        %v349 = vld [vmem:[%s342 + $0x18] sm:$0xf]
        %v350 = vld [vmem:[%s342 + $0x1c] sm:$0xf]
        %v351 = vld [vmem:[%s342 + $0x20] sm:$0xf]
        %v352 = vld [vmem:[%s342 + $0x24] sm:$0xf]
        %v353 = vld [vmem:[%s342 + $0x28] sm:$0xf]
        %v354 = vld [vmem:[%s342 + $0x2c] sm:$0xf]
        %v355 = vld [vmem:[%s342 + $0x30] sm:$0xf]
        %v356 = vld [vmem:[%s342 + $0x34] sm:$0xf]
        %v357 = vld [vmem:[%s342 + $0x38] sm:$0xf]
        %v358 = vld [vmem:[%s342 + $0x3c] sm:$0xf]
        %v362 = vunpack.c.l.b16 %v323
        %v363 = vunpack.c.l.b16 %v324
        %v364 = vunpack.c.l.b16 %v341
        %v365 = vpack.c.b16 %v363, %v362
        %v366 = vpack.c.b16 %v364, %v364
        %vm367 = vsmask.f32 7424
        %v369 = vshrl.u32 %v365, 16
        %v371 = vshll.u32 %v365, 16
        %v373 = vrot.slane %v371, 1
        %v374 = vor.u32 %v369, %v373
        %v376 = vshll.u32 %v366, 16
        %v378 = vrot.slane %v376, 1
        %v379 = vsel %vm367, %v374, %v378
        %v397 = vunpack.c.l.b16 %v343
        %v398 = vunpack.c.l.b16 %v344
        %v399 = vunpack.c.l.b16 %v345
        %v400 = vunpack.c.l.b16 %v346
        %v401 = vunpack.c.l.b16 %v347
        %v402 = vunpack.c.l.b16 %v348
        %v403 = vunpack.c.l.b16 %v349
        %v404 = vunpack.c.l.b16 %v350
        %v405 = vunpack.c.l.b16 %v351
        %v406 = vunpack.c.l.b16 %v352
        %v407 = vunpack.c.l.b16 %v353
        %v408 = vunpack.c.l.b16 %v354
        %v409 = vunpack.c.l.b16 %v355
        %v410 = vunpack.c.l.b16 %v356
        %v411 = vunpack.c.l.b16 %v357
        %v412 = vunpack.c.l.b16 %v358
        %v413 = vpack.c.b16 %v398, %v397
        %v414 = vpack.c.b16 %v400, %v399
        %v415 = vpack.c.b16 %v402, %v401
        %v416 = vpack.c.b16 %v404, %v403
        %v417 = vpack.c.b16 %v406, %v405
        %v418 = vpack.c.b16 %v408, %v407
        %v419 = vpack.c.b16 %v410, %v409
        %v420 = vpack.c.b16 %v412, %v411
        %429 = vmatprep.subr.bf16.mxu0 0
        %430 = vmatpush1.bf16.msra.mxu0 %v413
        %431 = vmatprep.subr.bf16.mxu0 0
        %432 = vmatpush1.bf16.msra.mxu0 %v414
        %433 = vmatprep.subr.bf16.mxu0 0
        %434 = vmatpush1.bf16.msra.mxu0 %v415
        %435 = vmatprep.subr.bf16.mxu0 0
        %436 = vmatpush1.bf16.msra.mxu0 %v416
        %437 = vmatprep.subr.bf16.mxu0 0
        %438 = vmatpush1.bf16.msra.mxu0 %v417
        %439 = vmatprep.subr.bf16.mxu0 0
        %440 = vmatpush1.bf16.msra.mxu0 %v418
        %441 = vmatprep.subr.bf16.mxu0 0
        %442 = vmatpush1.bf16.msra.mxu0 %v419
        %443 = vmatprep.subr.bf16.mxu0 0
        %444 = vmatpush1.bf16.msra.mxu0 %v420
        %445 = vmatprep.subr.bf16.mxu0 0
        %446 = vmatpush1.bf16.msra.mxu0 0
        %447 = vmatprep.subr.bf16.mxu0 0
        %448 = vmatpush1.bf16.msra.mxu0 0
        %449 = vmatprep.subr.bf16.mxu0 0
        %450 = vmatpush1.bf16.msra.mxu0 0
        %451 = vmatprep.subr.bf16.mxu0 0
        %452 = vmatpush1.bf16.msra.mxu0 0
        %453 = vmatprep.subr.bf16.mxu0 0
        %454 = vmatpush1.bf16.msra.mxu0 0
        %455 = vmatprep.subr.bf16.mxu0 0
        %456 = vmatpush1.bf16.msra.mxu0 0
        %457 = vmatprep.subr.bf16.mxu0 0
        %458 = vmatpush1.bf16.msra.mxu0 0
        %459 = vmatprep.subr.bf16.mxu0 0
        %460 = vmatpush1.bf16.msra.mxu0 0
        %461 = vmatprep.mubr.bf16.mxu0 0
        %462 = vmatmul.mubr.bf16.gmra.mrb[0].mxu0 %v379
        %v463 = vpop.f32.mrb[0].mxu0
        %v464 = vadd.f32 0.0, %v463
        %v465 = vpop.f32.mrb[0].mxu0
        %v466 = vpop.f32.mrb[0].mxu0
        %v467 = vadd.f32 0.0, %v466
        %v468 = vpop.f32.mrb[0].mxu0
        %469 = vdwg.mxu0
        %v487 = vunpack.c.l.b16 %v325
        %v488 = vunpack.c.l.b16 %v326
        %v489 = vunpack.c.l.b16 %v327
        %v490 = vunpack.c.l.b16 %v328
        %v491 = vunpack.c.l.b16 %v329
        %v492 = vunpack.c.l.b16 %v330
        %v493 = vunpack.c.l.b16 %v331
        %v494 = vunpack.c.l.b16 %v332
        %v495 = vunpack.c.l.b16 %v333
        %v496 = vunpack.c.l.b16 %v334
        %v497 = vunpack.c.l.b16 %v335
        %v498 = vunpack.c.l.b16 %v336
        %v499 = vunpack.c.l.b16 %v337
        %v500 = vunpack.c.l.b16 %v338
        %v501 = vunpack.c.l.b16 %v339
        %v502 = vunpack.c.l.b16 %v340
        %v503 = vpack.c.b16 %v488, %v487
        %v504 = vpack.c.b16 %v490, %v489
        %v505 = vpack.c.b16 %v492, %v491
        %v506 = vpack.c.b16 %v494, %v493
        %v507 = vpack.c.b16 %v496, %v495
        %v508 = vpack.c.b16 %v498, %v497
        %v509 = vpack.c.b16 %v500, %v499
        %v510 = vpack.c.b16 %v502, %v501
        %519 = vmatprep.subr.bf16.mxu0 0
        %520 = vmatpush1.bf16.msra.mxu0 %v503
        %521 = vmatprep.subr.bf16.mxu0 0
        %522 = vmatpush1.bf16.msra.mxu0 %v504
        %523 = vmatprep.subr.bf16.mxu0 0
        %524 = vmatpush1.bf16.msra.mxu0 %v505
        %525 = vmatprep.subr.bf16.mxu0 0
        %526 = vmatpush1.bf16.msra.mxu0 %v506
        %527 = vmatprep.subr.bf16.mxu0 0
        %528 = vmatpush1.bf16.msra.mxu0 %v507
        %529 = vmatprep.subr.bf16.mxu0 0
        %530 = vmatpush1.bf16.msra.mxu0 %v508
        %531 = vmatprep.subr.bf16.mxu0 0
        %532 = vmatpush1.bf16.msra.mxu0 %v509
        %533 = vmatprep.subr.bf16.mxu0 0
        %534 = vmatpush1.bf16.msra.mxu0 %v510
        %535 = vmatprep.subr.bf16.mxu0 0
        %536 = vmatpush1.bf16.msra.mxu0 0
        %537 = vmatprep.subr.bf16.mxu0 0
        %538 = vmatpush1.bf16.msra.mxu0 0
        %539 = vmatprep.subr.bf16.mxu0 0
        %540 = vmatpush1.bf16.msra.mxu0 0
        %541 = vmatprep.subr.bf16.mxu0 0
        %542 = vmatpush1.bf16.msra.mxu0 0
        %543 = vmatprep.subr.bf16.mxu0 0
        %544 = vmatpush1.bf16.msra.mxu0 0
        %545 = vmatprep.subr.bf16.mxu0 0
        %546 = vmatpush1.bf16.msra.mxu0 0
        %547 = vmatprep.subr.bf16.mxu0 0
        %548 = vmatpush1.bf16.msra.mxu0 0
        %549 = vmatprep.subr.bf16.mxu0 0
        %550 = vmatpush1.bf16.msra.mxu0 0
        %551 = vmatprep.mubr.bf16.mxu0 0
        %552 = vmatmul.mubr.bf16.gmra.mrb[0].mxu0 %v365
        %v553 = vpop.f32.mrb[0].mxu0
        %v554 = vadd.f32 %v464, %v553
        %v555 = vpop.f32.mrb[0].mxu0
        %v556 = vpop.f32.mrb[0].mxu0
        %v557 = vadd.f32 %v467, %v556
        %v558 = vpop.f32.mrb[0].mxu0
        %559 = vdwg.mxu0
        %v560 = vld [vmem:[#allocation2] sm:$0xe]
        %s561 = scalar_lea.vmem [#allocation6], 128
        %v562 = vld [vmem:[%s561] sm:$0xf]
        %v563 = vld [vmem:[%s561 + $0x4] sm:$0xf]
        %v564 = vld [vmem:[%s561 + $0x8] sm:$0xf]
        %v565 = vld [vmem:[%s561 + $0xc] sm:$0xf]
        %v566 = vld [vmem:[%s561 + $0x10] sm:$0xf]
        %v567 = vld [vmem:[%s561 + $0x14] sm:$0xf]
        %v568 = vld [vmem:[%s561 + $0x18] sm:$0xf]
        %v569 = vld [vmem:[%s561 + $0x1c] sm:$0xf]
        %v570 = vld [vmem:[%s561 + $0x20] sm:$0xf]
        %v571 = vld [vmem:[%s561 + $0x24] sm:$0xf]
        %v572 = vld [vmem:[%s561 + $0x28] sm:$0xf]
        %v573 = vld [vmem:[%s561 + $0x2c] sm:$0xf]
        %v574 = vld [vmem:[%s561 + $0x30] sm:$0xf]
        %v575 = vld [vmem:[%s561 + $0x34] sm:$0xf]
        %v576 = vld [vmem:[%s561 + $0x38] sm:$0xf]
        %v577 = vld [vmem:[%s561 + $0x3c] sm:$0xf]
        %v579 = vunpack.c.l.b16 %v560
        %v580 = vpack.c.b16 %v363, %v579
        %vm581 = vcmask 1046528
        %v582 = vrot.slane %v580, 1
        %v583 = vrot.slane %v366, 1
        %v584 = vsel %vm581, %v582, %v583
        %v602 = vunpack.c.l.b16 %v562
        %v603 = vunpack.c.l.b16 %v563
        %v604 = vunpack.c.l.b16 %v564
        %v605 = vunpack.c.l.b16 %v565
        %v606 = vunpack.c.l.b16 %v566
        %v607 = vunpack.c.l.b16 %v567
        %v608 = vunpack.c.l.b16 %v568
        %v609 = vunpack.c.l.b16 %v569
        %v610 = vunpack.c.l.b16 %v570
        %v611 = vunpack.c.l.b16 %v571
        %v612 = vunpack.c.l.b16 %v572
        %v613 = vunpack.c.l.b16 %v573
        %v614 = vunpack.c.l.b16 %v574
        %v615 = vunpack.c.l.b16 %v575
        %v616 = vunpack.c.l.b16 %v576
        %v617 = vunpack.c.l.b16 %v577
        %v618 = vpack.c.b16 %v603, %v602
        %v619 = vpack.c.b16 %v605, %v604
        %v620 = vpack.c.b16 %v607, %v606
        %v621 = vpack.c.b16 %v609, %v608
        %v622 = vpack.c.b16 %v611, %v610
        %v623 = vpack.c.b16 %v613, %v612
        %v624 = vpack.c.b16 %v615, %v614
        %v625 = vpack.c.b16 %v617, %v616
        %634 = vmatprep.subr.bf16.mxu0 0
        %635 = vmatpush1.bf16.msra.mxu0 %v618
        %636 = vmatprep.subr.bf16.mxu0 0
        %637 = vmatpush1.bf16.msra.mxu0 %v619
        %638 = vmatprep.subr.bf16.mxu0 0
        %639 = vmatpush1.bf16.msra.mxu0 %v620
        %640 = vmatprep.subr.bf16.mxu0 0
        %641 = vmatpush1.bf16.msra.mxu0 %v621
        %642 = vmatprep.subr.bf16.mxu0 0
        %643 = vmatpush1.bf16.msra.mxu0 %v622
        %644 = vmatprep.subr.bf16.mxu0 0
        %645 = vmatpush1.bf16.msra.mxu0 %v623
        %646 = vmatprep.subr.bf16.mxu0 0
        %647 = vmatpush1.bf16.msra.mxu0 %v624
        %648 = vmatprep.subr.bf16.mxu0 0
        %649 = vmatpush1.bf16.msra.mxu0 %v625
        %650 = vmatprep.subr.bf16.mxu0 0
        %651 = vmatpush1.bf16.msra.mxu0 0
        %652 = vmatprep.subr.bf16.mxu0 0
        %653 = vmatpush1.bf16.msra.mxu0 0
        %654 = vmatprep.subr.bf16.mxu0 0
        %655 = vmatpush1.bf16.msra.mxu0 0
        %656 = vmatprep.subr.bf16.mxu0 0
        %657 = vmatpush1.bf16.msra.mxu0 0
        %658 = vmatprep.subr.bf16.mxu0 0
        %659 = vmatpush1.bf16.msra.mxu0 0
        %660 = vmatprep.subr.bf16.mxu0 0
        %661 = vmatpush1.bf16.msra.mxu0 0
        %662 = vmatprep.subr.bf16.mxu0 0
        %663 = vmatpush1.bf16.msra.mxu0 0
        %664 = vmatprep.subr.bf16.mxu0 0
        %665 = vmatpush1.bf16.msra.mxu0 0
        %666 = vmatprep.mubr.bf16.mxu0 0
        %667 = vmatmul.mubr.bf16.gmra.mrb[0].mxu0 %v584
        %v668 = vpop.f32.mrb[0].mxu0
        %v669 = vadd.f32 0.0, %v668
        %v670 = vpop.f32.mrb[0].mxu0
        %v671 = vpop.f32.mrb[0].mxu0
        %v672 = vadd.f32 0.0, %v671
        %v673 = vpop.f32.mrb[0].mxu0
        %674 = vdwg.mxu0
        %v675 = vadd.f32 %v554, %v669
        %v676 = vadd.f32 %v557, %v672
        %v677 = vld [vmem:[%s2] sm:$0x1]
        %v679 = vlaneseq
        %v680 = vshrl.u32 %v679, 7
        %v681 = vsub.s32 0, %v680
        %v682 = vrot.slane %v677, %v681
        %v684 = vadd.f32 %v675, %v682
        %v685 = vadd.f32 %v676, %v682
        %v686 = vmax.f32 %v684, 0.0
        %v687 = vmax.f32 %v685, 0.0
        %v688 = vpack.c.bf16 %v687, %v686
        %v690 = vunpack.c.l.b16 %v688
        %v691 = vunpack.c.h.b16 %v688
        %v692 = vpack.c.b16 %v690, %v690
        %v693 = vpack.c.b16 %v691, %v691
        %v695 = vshrl.u32 %v692, 16
        %v697 = vrot.slane %v695, 7
        %v698 = vshll.u32 %v692, 16
        %v700 = vor.u32 %v697, %v698
        %v701 = vrot.slane %v697, 4
        %v703 = vshrl.u32 %v693, 16
        %v705 = vrot.slane %v703, 7
        %v706 = vshll.u32 %v693, 16
        %v708 = vor.u32 %v705, %v706
        %v709 = vsel %vm293, %v701, %v708
        %v710 = vrot.slane %v705, 4
        %v714 = vsel %vm315, %v700, %v323
        %715 = vst [vmem:[#allocation2] sm:$0xf] %v714
        %716 = vst [vmem:[#allocation2 + $0x4] sm:$0xf] %v709
        %v717 = vld [vmem:[#allocation2 + $0x8] sm:$0x1]
        %v718 = vsel %vm275, %v710, %v717
        %719 = vst [vmem:[#allocation2 + $0x8] sm:$0x1] %v718
        %v720 = vld [vmem:[#allocation2] sm:$0xf]
        %v721 = vld [vmem:[#allocation2 + $0x4] sm:$0xf]
        %v722 = vld [vmem:[#allocation8] sm:$0xf]
        %v723 = vld [vmem:[#allocation8 + $0x4] sm:$0xf]
        %v724 = vld [vmem:[#allocation8 + $0x8] sm:$0xf]
        %v725 = vld [vmem:[#allocation8 + $0xc] sm:$0xf]
        %v726 = vld [vmem:[#allocation8 + $0x10] sm:$0xf]
        %v727 = vld [vmem:[#allocation8 + $0x14] sm:$0xf]
        %v728 = vld [vmem:[#allocation8 + $0x18] sm:$0xf]
        %v729 = vld [vmem:[#allocation8 + $0x1c] sm:$0xf]
        %v730 = vld [vmem:[#allocation8 + $0x20] sm:$0xf]
        %v731 = vld [vmem:[#allocation8 + $0x24] sm:$0xf]
        %v732 = vld [vmem:[#allocation8 + $0x28] sm:$0xf]
        %v733 = vld [vmem:[#allocation8 + $0x2c] sm:$0xf]
        %v734 = vld [vmem:[#allocation8 + $0x30] sm:$0xf]
        %v735 = vld [vmem:[#allocation8 + $0x34] sm:$0xf]
        %v736 = vld [vmem:[#allocation8 + $0x38] sm:$0xf]
        %v737 = vld [vmem:[#allocation8 + $0x3c] sm:$0xf]
        %v738 = vld [vmem:[#allocation2 + $0x8] sm:$0x1]
        %s739 = scalar_lea.vmem [#allocation8], 64
        %v740 = vld [vmem:[%s739] sm:$0xf]
        %v741 = vld [vmem:[%s739 + $0x4] sm:$0xf]
        %v742 = vld [vmem:[%s739 + $0x8] sm:$0xf]
        %v743 = vld [vmem:[%s739 + $0xc] sm:$0xf]
        %v744 = vld [vmem:[%s739 + $0x10] sm:$0xf]
        %v745 = vld [vmem:[%s739 + $0x14] sm:$0xf]
        %v746 = vld [vmem:[%s739 + $0x18] sm:$0xf]
        %v747 = vld [vmem:[%s739 + $0x1c] sm:$0xf]
        %v748 = vld [vmem:[%s739 + $0x20] sm:$0xf]
        %v749 = vld [vmem:[%s739 + $0x24] sm:$0xf]
        %v750 = vld [vmem:[%s739 + $0x28] sm:$0xf]
        %v751 = vld [vmem:[%s739 + $0x2c] sm:$0xf]
        %v752 = vld [vmem:[%s739 + $0x30] sm:$0xf]
        %v753 = vld [vmem:[%s739 + $0x34] sm:$0xf]
        %v754 = vld [vmem:[%s739 + $0x38] sm:$0xf]
        %v755 = vld [vmem:[%s739 + $0x3c] sm:$0xf]
        %v759 = vunpack.c.l.b16 %v720
        %v760 = vunpack.c.l.b16 %v721
        %v761 = vunpack.c.l.b16 %v738
        %v762 = vpack.c.b16 %v760, %v759
        %v763 = vpack.c.b16 %v761, %v761
        %v765 = vshrl.u32 %v762, 16
        %v767 = vshll.u32 %v762, 16
        %v769 = vrot.slane %v767, 1
        %v770 = vor.u32 %v765, %v769
        %v772 = vshll.u32 %v763, 16
        %v774 = vrot.slane %v772, 1
        %v775 = vsel %vm367, %v770, %v774
        %v793 = vunpack.c.l.b16 %v740
        %v794 = vunpack.c.l.b16 %v741
        %v795 = vunpack.c.l.b16 %v742
        %v796 = vunpack.c.l.b16 %v743
        %v797 = vunpack.c.l.b16 %v744
        %v798 = vunpack.c.l.b16 %v745
        %v799 = vunpack.c.l.b16 %v746
        %v800 = vunpack.c.l.b16 %v747
        %v801 = vunpack.c.l.b16 %v748
        %v802 = vunpack.c.l.b16 %v749
        %v803 = vunpack.c.l.b16 %v750
        %v804 = vunpack.c.l.b16 %v751
        %v805 = vunpack.c.l.b16 %v752
        %v806 = vunpack.c.l.b16 %v753
        %v807 = vunpack.c.l.b16 %v754
        %v808 = vunpack.c.l.b16 %v755
        %v809 = vpack.c.b16 %v794, %v793
        %v810 = vpack.c.b16 %v796, %v795
        %v811 = vpack.c.b16 %v798, %v797
        %v812 = vpack.c.b16 %v800, %v799
        %v813 = vpack.c.b16 %v802, %v801
        %v814 = vpack.c.b16 %v804, %v803
        %v815 = vpack.c.b16 %v806, %v805
        %v816 = vpack.c.b16 %v808, %v807
        %825 = vmatprep.subr.bf16.mxu0 0
        %826 = vmatpush1.bf16.msra.mxu0 %v809
        %827 = vmatprep.subr.bf16.mxu0 0
        %828 = vmatpush1.bf16.msra.mxu0 %v810
        %829 = vmatprep.subr.bf16.mxu0 0
        %830 = vmatpush1.bf16.msra.mxu0 %v811
        %831 = vmatprep.subr.bf16.mxu0 0
        %832 = vmatpush1.bf16.msra.mxu0 %v812
        %833 = vmatprep.subr.bf16.mxu0 0
        %834 = vmatpush1.bf16.msra.mxu0 %v813
        %835 = vmatprep.subr.bf16.mxu0 0
        %836 = vmatpush1.bf16.msra.mxu0 %v814
        %837 = vmatprep.subr.bf16.mxu0 0
        %838 = vmatpush1.bf16.msra.mxu0 %v815
        %839 = vmatprep.subr.bf16.mxu0 0
        %840 = vmatpush1.bf16.msra.mxu0 %v816
        %841 = vmatprep.subr.bf16.mxu0 0
        %842 = vmatpush1.bf16.msra.mxu0 0
        %843 = vmatprep.subr.bf16.mxu0 0
        %844 = vmatpush1.bf16.msra.mxu0 0
        %845 = vmatprep.subr.bf16.mxu0 0
        %846 = vmatpush1.bf16.msra.mxu0 0
        %847 = vmatprep.subr.bf16.mxu0 0
        %848 = vmatpush1.bf16.msra.mxu0 0
        %849 = vmatprep.subr.bf16.mxu0 0
        %850 = vmatpush1.bf16.msra.mxu0 0
        %851 = vmatprep.subr.bf16.mxu0 0
        %852 = vmatpush1.bf16.msra.mxu0 0
        %853 = vmatprep.subr.bf16.mxu0 0
        %854 = vmatpush1.bf16.msra.mxu0 0
        %855 = vmatprep.subr.bf16.mxu0 0
        %856 = vmatpush1.bf16.msra.mxu0 0
        %857 = vmatprep.mubr.bf16.mxu0 0
        %858 = vmatmul.mubr.bf16.gmra.mrb[0].mxu0 %v775
        %v859 = vpop.f32.mrb[0].mxu0
        %v860 = vadd.f32 0.0, %v859
        %v861 = vpop.f32.mrb[0].mxu0
        %v862 = vpop.f32.mrb[0].mxu0
        %v863 = vadd.f32 0.0, %v862
        %v864 = vpop.f32.mrb[0].mxu0
        %865 = vdwg.mxu0
        %v883 = vunpack.c.l.b16 %v722
        %v884 = vunpack.c.l.b16 %v723
        %v885 = vunpack.c.l.b16 %v724
        %v886 = vunpack.c.l.b16 %v725
        %v887 = vunpack.c.l.b16 %v726
        %v888 = vunpack.c.l.b16 %v727
        %v889 = vunpack.c.l.b16 %v728
        %v890 = vunpack.c.l.b16 %v729
        %v891 = vunpack.c.l.b16 %v730
        %v892 = vunpack.c.l.b16 %v731
        %v893 = vunpack.c.l.b16 %v732
        %v894 = vunpack.c.l.b16 %v733
        %v895 = vunpack.c.l.b16 %v734
        %v896 = vunpack.c.l.b16 %v735
        %v897 = vunpack.c.l.b16 %v736
        %v898 = vunpack.c.l.b16 %v737
        %v899 = vpack.c.b16 %v884, %v883
        %v900 = vpack.c.b16 %v886, %v885
        %v901 = vpack.c.b16 %v888, %v887
        %v902 = vpack.c.b16 %v890, %v889
        %v903 = vpack.c.b16 %v892, %v891
        %v904 = vpack.c.b16 %v894, %v893
        %v905 = vpack.c.b16 %v896, %v895
        %v906 = vpack.c.b16 %v898, %v897
        %915 = vmatprep.subr.bf16.mxu0 0
        %916 = vmatpush1.bf16.msra.mxu0 %v899
        %917 = vmatprep.subr.bf16.mxu0 0
        %918 = vmatpush1.bf16.msra.mxu0 %v900
        %919 = vmatprep.subr.bf16.mxu0 0
        %920 = vmatpush1.bf16.msra.mxu0 %v901
        %921 = vmatprep.subr.bf16.mxu0 0
        %922 = vmatpush1.bf16.msra.mxu0 %v902
        %923 = vmatprep.subr.bf16.mxu0 0
        %924 = vmatpush1.bf16.msra.mxu0 %v903
        %925 = vmatprep.subr.bf16.mxu0 0
        %926 = vmatpush1.bf16.msra.mxu0 %v904
        %927 = vmatprep.subr.bf16.mxu0 0
        %928 = vmatpush1.bf16.msra.mxu0 %v905
        %929 = vmatprep.subr.bf16.mxu0 0
        %930 = vmatpush1.bf16.msra.mxu0 %v906
        %931 = vmatprep.subr.bf16.mxu0 0
        %932 = vmatpush1.bf16.msra.mxu0 0
        %933 = vmatprep.subr.bf16.mxu0 0
        %934 = vmatpush1.bf16.msra.mxu0 0
        %935 = vmatprep.subr.bf16.mxu0 0
        %936 = vmatpush1.bf16.msra.mxu0 0
        %937 = vmatprep.subr.bf16.mxu0 0
        %938 = vmatpush1.bf16.msra.mxu0 0
        %939 = vmatprep.subr.bf16.mxu0 0
        %940 = vmatpush1.bf16.msra.mxu0 0
        %941 = vmatprep.subr.bf16.mxu0 0
        %942 = vmatpush1.bf16.msra.mxu0 0
        %943 = vmatprep.subr.bf16.mxu0 0
        %944 = vmatpush1.bf16.msra.mxu0 0
        %945 = vmatprep.subr.bf16.mxu0 0
        %946 = vmatpush1.bf16.msra.mxu0 0
        %947 = vmatprep.mubr.bf16.mxu0 0
        %948 = vmatmul.mubr.bf16.gmra.mrb[0].mxu0 %v762
        %v949 = vpop.f32.mrb[0].mxu0
        %v950 = vadd.f32 %v860, %v949
        %v951 = vpop.f32.mrb[0].mxu0
        %v952 = vpop.f32.mrb[0].mxu0
        %v953 = vadd.f32 %v863, %v952
        %v954 = vpop.f32.mrb[0].mxu0
        %955 = vdwg.mxu0
        %v956 = vld [vmem:[#allocation2] sm:$0xe]
        %s957 = scalar_lea.vmem [#allocation8], 128
        %v958 = vld [vmem:[%s957] sm:$0xf]
        %v959 = vld [vmem:[%s957 + $0x4] sm:$0xf]
        %v960 = vld [vmem:[%s957 + $0x8] sm:$0xf]
        %v961 = vld [vmem:[%s957 + $0xc] sm:$0xf]
        %v962 = vld [vmem:[%s957 + $0x10] sm:$0xf]
        %v963 = vld [vmem:[%s957 + $0x14] sm:$0xf]
        %v964 = vld [vmem:[%s957 + $0x18] sm:$0xf]
        %v965 = vld [vmem:[%s957 + $0x1c] sm:$0xf]
        %v966 = vld [vmem:[%s957 + $0x20] sm:$0xf]
        %v967 = vld [vmem:[%s957 + $0x24] sm:$0xf]
        %v968 = vld [vmem:[%s957 + $0x28] sm:$0xf]
        %v969 = vld [vmem:[%s957 + $0x2c] sm:$0xf]
        %v970 = vld [vmem:[%s957 + $0x30] sm:$0xf]
        %v971 = vld [vmem:[%s957 + $0x34] sm:$0xf]
        %v972 = vld [vmem:[%s957 + $0x38] sm:$0xf]
        %v973 = vld [vmem:[%s957 + $0x3c] sm:$0xf]
        %v975 = vunpack.c.l.b16 %v956
        %v976 = vpack.c.b16 %v760, %v975
        %v977 = vrot.slane %v976, 1
        %v978 = vrot.slane %v763, 1
        %v979 = vsel %vm581, %v977, %v978
        %v997 = vunpack.c.l.b16 %v958
        %v998 = vunpack.c.l.b16 %v959
        %v999 = vunpack.c.l.b16 %v960
        %v1000 = vunpack.c.l.b16 %v961
        %v1001 = vunpack.c.l.b16 %v962
        %v1002 = vunpack.c.l.b16 %v963
        %v1003 = vunpack.c.l.b16 %v964
        %v1004 = vunpack.c.l.b16 %v965
        %v1005 = vunpack.c.l.b16 %v966
        %v1006 = vunpack.c.l.b16 %v967
        %v1007 = vunpack.c.l.b16 %v968
        %v1008 = vunpack.c.l.b16 %v969
        %v1009 = vunpack.c.l.b16 %v970
        %v1010 = vunpack.c.l.b16 %v971
        %v1011 = vunpack.c.l.b16 %v972
        %v1012 = vunpack.c.l.b16 %v973
        %v1013 = vpack.c.b16 %v998, %v997
        %v1014 = vpack.c.b16 %v1000, %v999
        %v1015 = vpack.c.b16 %v1002, %v1001
        %v1016 = vpack.c.b16 %v1004, %v1003
        %v1017 = vpack.c.b16 %v1006, %v1005
        %v1018 = vpack.c.b16 %v1008, %v1007
        %v1019 = vpack.c.b16 %v1010, %v1009
        %v1020 = vpack.c.b16 %v1012, %v1011
        %1029 = vmatprep.subr.bf16.mxu0 0
        %1030 = vmatpush1.bf16.msra.mxu0 %v1013
        %1031 = vmatprep.subr.bf16.mxu0 0
        %1032 = vmatpush1.bf16.msra.mxu0 %v1014
        %1033 = vmatprep.subr.bf16.mxu0 0
        %1034 = vmatpush1.bf16.msra.mxu0 %v1015
        %1035 = vmatprep.subr.bf16.mxu0 0
        %1036 = vmatpush1.bf16.msra.mxu0 %v1016
        %1037 = vmatprep.subr.bf16.mxu0 0
        %1038 = vmatpush1.bf16.msra.mxu0 %v1017
        %1039 = vmatprep.subr.bf16.mxu0 0
        %1040 = vmatpush1.bf16.msra.mxu0 %v1018
        %1041 = vmatprep.subr.bf16.mxu0 0
        %1042 = vmatpush1.bf16.msra.mxu0 %v1019
        %1043 = vmatprep.subr.bf16.mxu0 0
        %1044 = vmatpush1.bf16.msra.mxu0 %v1020
        %1045 = vmatprep.subr.bf16.mxu0 0
        %1046 = vmatpush1.bf16.msra.mxu0 0
        %1047 = vmatprep.subr.bf16.mxu0 0
        %1048 = vmatpush1.bf16.msra.mxu0 0
        %1049 = vmatprep.subr.bf16.mxu0 0
        %1050 = vmatpush1.bf16.msra.mxu0 0
        %1051 = vmatprep.subr.bf16.mxu0 0
        %1052 = vmatpush1.bf16.msra.mxu0 0
        %1053 = vmatprep.subr.bf16.mxu0 0
        %1054 = vmatpush1.bf16.msra.mxu0 0
        %1055 = vmatprep.subr.bf16.mxu0 0
        %1056 = vmatpush1.bf16.msra.mxu0 0
        %1057 = vmatprep.subr.bf16.mxu0 0
        %1058 = vmatpush1.bf16.msra.mxu0 0
        %1059 = vmatprep.subr.bf16.mxu0 0
        %1060 = vmatpush1.bf16.msra.mxu0 0
        %1061 = vmatprep.mubr.bf16.mxu0 0
        %1062 = vmatmul.mubr.bf16.gmra.mrb[0].mxu0 %v979
        %v1063 = vpop.f32.mrb[0].mxu0
        %v1064 = vadd.f32 0.0, %v1063
        %v1065 = vpop.f32.mrb[0].mxu0
        %v1066 = vpop.f32.mrb[0].mxu0
        %v1067 = vadd.f32 0.0, %v1066
        %v1068 = vpop.f32.mrb[0].mxu0
        %1069 = vdwg.mxu0
        %v1070 = vadd.f32 %v950, %v1064
        %v1071 = vadd.f32 %v953, %v1067
        %v1072 = vld [vmem:[%s4] sm:$0x1]
        %v1074 = vlaneseq
        %v1075 = vshrl.u32 %v1074, 7
        %v1076 = vsub.s32 0, %v1075
        %v1077 = vrot.slane %v1072, %v1076
        %v1079 = vadd.f32 %v1070, %v1077
        %v1080 = vadd.f32 %v1071, %v1077
        %v1081 = vadd.f32 %v1079, %v284
        %v1082 = vadd.f32 %v1080, %v285
        %v1083 = vmax.f32 %v1081, 0.0
        %v1084 = vmax.f32 %v1082, 0.0
        %1085 = vst [vmem:[%s271] sm:$0xff] %v1083
        %1086 = vst [vmem:[%s271 + $0x8] sm:$0xff] %v1084
        %s1087 = sand.u32 %s141, 1
        %s1088 = scalar_lea.sflag [#allocation5], %s1087
        %s1089 = sand.u32 %s141, 1
        %s1090 = smul.addr %s1089, 16
        %s1091 = scalar_lea.vmem [#allocation9], %s1090
        // Predicated region
        $region53: #{tpu_custom_call.1} parent=39 // pred_check
          %p1092 = pneg %p151
        $region54: #{tpu_custom_call.1} parent=39 // pred_check_branch
          %1094 = sbr.rel (%p1092) target = $region56
        $region55: #{tpu_custom_call.1} parent=39 // pred_region
          %s1096 = ssub.s32 256, 256
          %1097 = vsyncadd %s1088, %s1096
          %s1098 = smul.addr %s23, 2
          %s1099 = smul.addr %s1098, 128
          %s1100 = scalar_lea.hbm %s5, %s1099
          %s1101 = sshll.u32 %s1091, 4
          %s1102 = int_to_ptr.vmem [resolvable:$true] %s1101
          %1107 = dma.vmem_to_hbm [thread:$0]  %s1102, 256, %s1100, %s1088, 128, 128, 8
        $region56: #{tpu_custom_call.1} parent=39 // pred_fallthru
          _
      $region40: #{tpu_custom_call.1} parent=5 // pred_fallthru
        _
      %p1108 = scmp.le.s32.totalorder 2, %s18
      // Predicated region
      $region57: #{tpu_custom_call.1} parent=5 // pred_check
        %p1109 = pneg %p1108
      $region58: #{tpu_custom_call.1} parent=5 // pred_check_branch
        %1111 = sbr.rel (%p1109) target = $region60
      $region59: #{tpu_custom_call.1} parent=5 // pred_region
        %s1112 = ssub.s32 %s18, 2
        // Predicated region
        $region61: #{tpu_custom_call.1} parent=59 // pred_check
          %p1113 = pneg %p157
        $region62: #{tpu_custom_call.1} parent=59 // pred_check_branch
          %1115 = sbr.rel (%p1113) target = $region64
        $region63: #{tpu_custom_call.1} parent=59 // pred_region
          %s1116 = sand.u32 %s142, 1
          %s1117 = scalar_lea.sflag [#allocation5], %s1116
          %s1118 = sand.u32 %s142, 1
          %s1119 = smul.addr %s1118, 16
          %s1120 = scalar_lea.vmem [#allocation9], %s1119
          %1121 = dma.done %s1117, 256
        $region64: #{tpu_custom_call.1} parent=59 // pred_fallthru
          _
      $region60: #{tpu_custom_call.1} parent=5 // pred_fallthru
        _
    $region6: #{tpu_custom_call.1} parent=1 // loop_footer
      %s22 = sadd.s32 1, %s18
    $region7: #{tpu_custom_call.1} parent=1 // loop_footer_branch
      %17 = sbr.rel target = $region3
    $region8: #{tpu_custom_call.1} parent=1 // loop_exit
      _
    %1122 = vsyncpa [#allocation4], 1
    %s1123 = scalar_lea.sflag [#allocation4], 1
    %1124 = vsyncpa %s1123, 1
    %1125 = vsyncpa [#allocation7], 1
    %1126 = vsyncpa [#allocation5], 1
    %s1127 = scalar_lea.sflag [#allocation5], 1
    %1128 = vsyncpa %s1127, 1

</llo_original>
